<compile_context>
chip_gen: v6e
topology: v6e:2x2x1
jax: 0.10.0
libtpu: 0.0.40
codegen_flags: <defaults>
</compile_context>

<pallas_src>
import jax
import jax.numpy as jnp
from jax.experimental import pallas as pl
from jax.experimental.pallas import tpu as pltpu


def _round_up(x, m):
    return ((x + m - 1) // m) * m


def _fusion_fc_kernel(f1_ref, f2_ref, wa1_ref, wa2_ref, ba_ref,
                      wc_ref, bc_ref, out_ref):
    """One row-tile of the fused FusionFC forward.

    f1_ref, f2_ref : (TM, Ep)  bf16 feature tiles (pipelined per grid step)
    wa1_ref,wa2_ref: (Ep, Ep)  bf16 resident halves of w_att^T (single-buffered)
    ba_ref         : (1, Ep)   f32 gate bias (lane padded)
    wc_ref         : (Ep, Cp)  bf16 resident cls weight^T (lane padded)
    bc_ref         : (1, Cp)   f32 cls bias (lane padded)
    out_ref        : (TM, Cp)  f32 logits tile (lane-dense, unmasked stores)
    """
    f1 = f1_ref[...]
    f2 = f2_ref[...]

    # Gate: sigmoid(cat(f1, f2) @ Wa^T + ba) as two MXU matmuls (no concat),
    # bf16 operands with f32 accumulation.
    pre = (jnp.dot(f1, wa1_ref[...], preferred_element_type=jnp.float32)
           + jnp.dot(f2, wa2_ref[...], preferred_element_type=jnp.float32)
           + ba_ref[...])
    att = jax.nn.sigmoid(pre)                       # EUP transcendental, f32

    # Blend in f32 (v5e has no bf16 VALU/EUP); 3-op form: f1 + att*(f2 - f1).
    f1f = f1.astype(jnp.float32)
    f2f = f2.astype(jnp.float32)
    fused = f1f + att * (f2f - f1f)

    out_ref[...] = (jnp.dot(fused.astype(wc_ref.dtype), wc_ref[...],
                            preferred_element_type=jnp.float32)
                    + bc_ref[...]).astype(out_ref.dtype)


def prepare_fusion_fc_params(w_att, b_att, w_cls, b_cls, *,
                             stream_dtype=jnp.bfloat16):
    """One-time weight preprocessing (hoisted out of the per-call hot path).

    w_att : (E, 2E) float32   PyTorch Linear(2E, E).weight layout
    b_att : (E,)    float32
    w_cls : (C, E)  float32   PyTorch Linear(E, C).weight layout
    b_cls : (C,)    float32
    """
    e = w_att.shape[0]
    c = w_cls.shape[0]
    assert w_att.shape == (e, 2 * e)
    assert w_cls.shape == (c, e)

    ep = _round_up(e, 128)   # feature-lane / MXU-K pad (no-op for E=512 etc.)
    cp = _round_up(c, 128)   # logits lane pad -> unmasked lane-dense stores

    # Split w_att over the concatenated input dim and pre-transpose so the
    # kernel does (TM, Ep) @ (Ep, Ep). Zero pads: padded K rows multiply the
    # zero-padded feature lanes; padded output cols give a harmless gate of
    # sigmoid(0)=0.5 acting on zero features.
    wa1_t = jnp.pad(w_att[:, :e].T, ((0, ep - e), (0, ep - e))).astype(stream_dtype)
    wa2_t = jnp.pad(w_att[:, e:].T, ((0, ep - e), (0, ep - e))).astype(stream_dtype)
    ba = jnp.pad(b_att.astype(jnp.float32), (0, ep - e)).reshape(1, ep)
    wc_t = jnp.pad(w_cls.T, ((0, ep - e), (0, cp - c))).astype(stream_dtype)
    bc = jnp.pad(b_cls.astype(jnp.float32), (0, cp - c)).reshape(1, cp)

    return dict(wa1_t=wa1_t, wa2_t=wa2_t, ba=ba, wc_t=wc_t, bc=bc,
                e=e, c=c, ep=ep, cp=cp, stream_dtype=stream_dtype)


def fusion_fc_apply(feature1, feature2, params, *, tm=1024):
    """FusionFC forward with pre-prepared weights.

    feature1, feature2 : (N, T, E) float
    returns logits (N, T, C) float32
    """
    n, t, e = feature1.shape
    assert e == params["e"]
    ep, cp, c = params["ep"], params["cp"], params["c"]
    stream_dtype = params["stream_dtype"]
    m = n * t

    # Row tile: as large as possible (amortizes ~0.35us per grid step, keeps
    # HBM streaming near roofline). Align to the 256-row MXU pass size when
    # tiling; use the full extent when M fits in one tile.
    if tm >= m:
        tm = m
    elif tm >= 256:
        tm = (tm // 256) * 256
    else:
        tm = max(8, (tm // 8) * 8)
    grid = (pl.cdiv(m, tm),)

    f1 = feature1.reshape(m, e)
    f2 = feature2.reshape(m, e)
    if ep != e:
        f1 = jnp.pad(f1, ((0, 0), (0, ep - e)))
        f2 = jnp.pad(f2, ((0, 0), (0, ep - e)))
    f1 = f1.astype(stream_dtype)   # halve the dominant HBM feature stream
    f2 = f2.astype(stream_dtype)

    row = lambda i: (i, 0)      # feature / output tiles walk the row axis
    const = lambda i: (0, 0)    # weights stay resident across all grid steps
    resident = pl.Buffered(buffer_count=1)   # DMA'd once; skip double buffer

    itemsize = jnp.dtype(stream_dtype).itemsize
    # VMEM budget: double-buffered feature/output tiles + single-buffered
    # resident weights, with 2x headroom, clamped to [32, 64] MiB so large
    # row tiles still fit v7x's 64 MiB per core.
    buf_bytes = (2 * 2 * tm * ep * itemsize            # f1/f2, double-buffered
                 + 2 * tm * cp * 4                     # f32 logits, double-buffered
                 + (2 * ep * ep + ep * cp) * itemsize  # resident bf16 weights
                 + (ep + cp) * 4)                      # resident f32 biases
    vmem_limit = int(min(64 << 20, max(32 << 20, 2 * buf_bytes)))

    cost = pl.CostEstimate(
        flops=2 * m * ep * (2 * ep + cp),
        transcendentals=m * ep,
        bytes_accessed=(2 * m * ep * itemsize + m * cp * 4
                        + (2 * ep * ep + ep * cp) * itemsize
                        + (ep + cp) * 4),
    )

    out = pl.pallas_call(
        _fusion_fc_kernel,
        out_shape=jax.ShapeDtypeStruct((m, cp), jnp.float32),
        grid_spec=pltpu.PrefetchScalarGridSpec(
            num_scalar_prefetch=0,
            grid=grid,
            in_specs=[
                pl.BlockSpec((tm, ep), row),                            # feature1
                pl.BlockSpec((tm, ep), row),                            # feature2
                pl.BlockSpec((ep, ep), const, pipeline_mode=resident),  # w_att half 1
                pl.BlockSpec((ep, ep), const, pipeline_mode=resident),  # w_att half 2
                pl.BlockSpec((1, ep), const, pipeline_mode=resident),   # b_att
                pl.BlockSpec((ep, cp), const, pipeline_mode=resident),  # w_cls^T
                pl.BlockSpec((1, cp), const, pipeline_mode=resident),   # b_cls
            ],
            out_specs=pl.BlockSpec((tm, cp), row),
        ),
        compiler_params=pltpu.CompilerParams(
            dimension_semantics=("parallel",),   # rows across TCs on v7x
            vmem_limit_bytes=vmem_limit,
        ),
        cost_estimate=cost,
    )(f1, f2, params["wa1_t"], params["wa2_t"], params["ba"],
      params["wc_t"], params["bc"])

    return out[:, :c].reshape(n, t, c)


def fusion_fc(feature1, feature2, w_att, b_att, w_cls, b_cls, *,
              tm=1024, stream_dtype=jnp.bfloat16):
    """Convenience wrapper: prep weights + run. Prefer calling
    prepare_fusion_fc_params() once at init and fusion_fc_apply() per step."""
    params = prepare_fusion_fc_params(w_att, b_att, w_cls, b_cls,
                                      stream_dtype=stream_dtype)
    return fusion_fc_apply(feature1, feature2, params, tm=tm)


if __name__ == "__main__":
    # Small deterministic shapes consistent with the module:
    # batch=2, seq=8, d_model=32, num_classes=40.
    batch, seq, d_model, num_classes = 2, 8, 32, 40

    key = jax.random.PRNGKey(0)
    k1, k2, k3, k4, k5, k6 = jax.random.split(key, 6)
    feature1 = jax.random.normal(k1, (batch, seq, d_model), jnp.float32)
    feature2 = jax.random.normal(k2, (batch, seq, d_model), jnp.float32)
    w_att = 0.05 * jax.random.normal(k3, (d_model, 2 * d_model), jnp.float32)
    b_att = 0.05 * jax.random.normal(k4, (d_model,), jnp.float32)
    w_cls = 0.05 * jax.random.normal(k5, (num_classes, d_model), jnp.float32)
    b_cls = 0.05 * jax.random.normal(k6, (num_classes,), jnp.float32)

    # Weight prep happens once (hoisted out of the per-call hot path).
    params = prepare_fusion_fc_params(w_att, b_att, w_cls, b_cls)

    # tm=8 -> grid of 2 row tiles even at demo size (exercises the pipeline).
    logits = fusion_fc_apply(feature1, feature2, params, tm=8)
    logits = jax.block_until_ready(logits)

    hp = jax.lax.Precision.HIGHEST

    # Reference 1: exact PyTorch forward semantics in f32 (detach is a no-op).
    f = jnp.concatenate([feature1, feature2], axis=-1)
    att = jax.nn.sigmoid(jnp.einsum("ntk,ek->nte", f, w_att, precision=hp)
                         + b_att)
    fused = att * feature2 + (1.0 - att) * feature1
    ref_f32 = jnp.einsum("nte,ce->ntc", fused, w_cls, precision=hp) + b_cls

    # Reference 2: same math with the kernel's bf16-streaming numerics
    # (bf16-rounded inputs/weights, f32 accumulation, bf16 re-quantized blend).
    bf = lambda x: x.astype(jnp.bfloat16).astype(jnp.float32)
    f1b, f2b = bf(feature1), bf(feature2)
    fb = jnp.concatenate([f1b, f2b], axis=-1)
    attb = jax.nn.sigmoid(
        jnp.einsum("ntk,ek->nte", fb, bf(w_att), precision=hp) + b_att)
    fusedb = bf(f1b + attb * (f2b - f1b))
    ref_bf16 = jnp.einsum("nte,ce->ntc", fusedb, bf(w_cls), precision=hp) + b_cls

    assert logits.shape == (batch, seq, num_classes)
    # Tight check against the bf16-consistent reference (kernel numerics).
    assert jnp.allclose(logits, ref_bf16, atol=2e-3, rtol=2e-3), (
        float(jnp.max(jnp.abs(logits - ref_bf16))))
    # Loose sanity check against the pure-f32 PyTorch-semantics reference
    # (documents the expected bf16-streaming precision gap).
    assert jnp.allclose(logits, ref_f32, atol=5e-2, rtol=5e-2), (
        float(jnp.max(jnp.abs(logits - ref_f32))))

    print("KERNEL_OK")
</pallas_src>

<mosaic_0001>
module attributes {stable_mosaic.version = 11 : i64} {
  func.func @_fusion_fc_kernel(%arg0: i32, %arg1: memref<8x128xbf16, #tpu.memory_space<vmem>>, %arg2: memref<8x128xbf16, #tpu.memory_space<vmem>>, %arg3: memref<128x128xbf16, #tpu.memory_space<vmem>>, %arg4: memref<128x128xbf16, #tpu.memory_space<vmem>>, %arg5: memref<1x128xf32, #tpu.memory_space<vmem>>, %arg6: memref<128x128xbf16, #tpu.memory_space<vmem>>, %arg7: memref<1x128xf32, #tpu.memory_space<vmem>>, %arg8: memref<8x128xf32, #tpu.memory_space<vmem>>) attributes {dimension_semantics = [#tpu.dimension_semantics<parallel>], iteration_bounds = array<i64: 2>, scalar_prefetch = 0 : i64, scratch_operands = 0 : i64, tpu.core_type = #tpu.core_type<tc>, window_params = [{transform_indices = @transform_0, window_bounds = array<i64: 8, 128>}, {transform_indices = @transform_1, window_bounds = array<i64: 8, 128>}, {pipeline_mode = #tpu.pipeline_mode<synchronous>, transform_indices = @transform_2, window_bounds = array<i64: 128, 128>}, {pipeline_mode = #tpu.pipeline_mode<synchronous>, transform_indices = @transform_3, window_bounds = array<i64: 128, 128>}, {pipeline_mode = #tpu.pipeline_mode<synchronous>, transform_indices = @transform_4, window_bounds = array<i64: 1, 128>}, {pipeline_mode = #tpu.pipeline_mode<synchronous>, transform_indices = @transform_5, window_bounds = array<i64: 128, 128>}, {pipeline_mode = #tpu.pipeline_mode<synchronous>, transform_indices = @transform_6, window_bounds = array<i64: 1, 128>}, {transform_indices = @transform_7, window_bounds = array<i64: 8, 128>}]} {
    %c0 = arith.constant 0 : index
    %c0_0 = arith.constant 0 : index
    %0 = vector.load %arg1[%c0, %c0_0] : memref<8x128xbf16, #tpu.memory_space<vmem>>, vector<8x128xbf16>
    %c0_1 = arith.constant 0 : index
    %c0_2 = arith.constant 0 : index
    %1 = vector.load %arg2[%c0_1, %c0_2] : memref<8x128xbf16, #tpu.memory_space<vmem>>, vector<8x128xbf16>
    %c0_3 = arith.constant 0 : index
    %c0_4 = arith.constant 0 : index
    %2 = vector.load %arg3[%c0_3, %c0_4] : memref<128x128xbf16, #tpu.memory_space<vmem>>, vector<128x128xbf16>
    %cst = arith.constant dense<0.000000e+00> : vector<8x128xf32>
    %3 = tpu.matmul %0, %2, %cst {dimension_numbers = #tpu.dot_dimension_numbers<[1], [0], [0], [1], [0, 0, 1, 1], [], []>} : vector<8x128xbf16>, vector<128x128xbf16>, vector<8x128xf32> -> vector<8x128xf32>
    %c0_5 = arith.constant 0 : index
    %c0_6 = arith.constant 0 : index
    %4 = vector.load %arg4[%c0_5, %c0_6] : memref<128x128xbf16, #tpu.memory_space<vmem>>, vector<128x128xbf16>
    %cst_7 = arith.constant dense<0.000000e+00> : vector<8x128xf32>
    %5 = tpu.matmul %1, %4, %cst_7 {dimension_numbers = #tpu.dot_dimension_numbers<[1], [0], [0], [1], [0, 0, 1, 1], [], []>} : vector<8x128xbf16>, vector<128x128xbf16>, vector<8x128xf32> -> vector<8x128xf32>
    %6 = arith.addf %3, %5 : vector<8x128xf32>
    %c0_8 = arith.constant 0 : index
    %c0_9 = arith.constant 0 : index
    %7 = vector.load %arg5[%c0_8, %c0_9] : memref<1x128xf32, #tpu.memory_space<vmem>>, vector<1x128xf32>
    %8 = vector.broadcast %7 : vector<1x128xf32> to vector<8x128xf32>
    %9 = arith.addf %6, %8 : vector<8x128xf32>
    %10 = arith.negf %9 : vector<8x128xf32>
    %11 = math.exp %10 : vector<8x128xf32>
    %cst_10 = arith.constant 1.000000e+00 : f32
    %12 = vector.broadcast %cst_10 : f32 to vector<8x128xf32>
    %13 = arith.addf %12, %11 : vector<8x128xf32>
    %14 = arith.divf %12, %13 : vector<8x128xf32>
    %15 = arith.extf %0 : vector<8x128xbf16> to vector<8x128xf32>
    %16 = arith.extf %1 : vector<8x128xbf16> to vector<8x128xf32>
    %17 = arith.subf %16, %15 : vector<8x128xf32>
    %18 = arith.mulf %14, %17 : vector<8x128xf32>
    %19 = arith.addf %15, %18 : vector<8x128xf32>
    %20 = arith.truncf %19 : vector<8x128xf32> to vector<8x128xbf16>
    %c0_11 = arith.constant 0 : index
    %c0_12 = arith.constant 0 : index
    %21 = vector.load %arg6[%c0_11, %c0_12] : memref<128x128xbf16, #tpu.memory_space<vmem>>, vector<128x128xbf16>
    %cst_13 = arith.constant dense<0.000000e+00> : vector<8x128xf32>
    %22 = tpu.matmul %20, %21, %cst_13 {dimension_numbers = #tpu.dot_dimension_numbers<[1], [0], [0], [1], [0, 0, 1, 1], [], []>} : vector<8x128xbf16>, vector<128x128xbf16>, vector<8x128xf32> -> vector<8x128xf32>
    %c0_14 = arith.constant 0 : index
    %c0_15 = arith.constant 0 : index
    %23 = vector.load %arg7[%c0_14, %c0_15] : memref<1x128xf32, #tpu.memory_space<vmem>>, vector<1x128xf32>
    %24 = vector.broadcast %23 : vector<1x128xf32> to vector<8x128xf32>
    %25 = arith.addf %22, %24 : vector<8x128xf32>
    %c0_16 = arith.constant 0 : index
    %c0_17 = arith.constant 0 : index
    %26 = vector.load %arg8[%c0_16, %c0_17] : memref<8x128xf32, #tpu.memory_space<vmem>>, vector<8x128xf32>
    tpu.vector_store %arg8[%c0_16, %c0_17], %25 {strides = array<i32>} : memref<8x128xf32, #tpu.memory_space<vmem>>, vector<8x128xf32>,
    return
  }
  func.func @transform_0(%arg0: i32) -> (i32, i32) {
    %c0_i32 = arith.constant 0 : i32
    %c0_i32_0 = arith.constant 0 : i32
    return %arg0, %c0_i32 : i32, i32
  }
  func.func @transform_1(%arg0: i32) -> (i32, i32) {
    %c0_i32 = arith.constant 0 : i32
    %c0_i32_0 = arith.constant 0 : i32
    return %arg0, %c0_i32 : i32, i32
  }
  func.func @transform_2(%arg0: i32) -> (i32, i32) {
    %c0_i32 = arith.constant 0 : i32
    %c0_i32_0 = arith.constant 0 : i32
    %c0_i32_1 = arith.constant 0 : i32
    return %c0_i32, %c0_i32_0 : i32, i32
  }
  func.func @transform_3(%arg0: i32) -> (i32, i32) {
    %c0_i32 = arith.constant 0 : i32
    %c0_i32_0 = arith.constant 0 : i32
    %c0_i32_1 = arith.constant 0 : i32
    return %c0_i32, %c0_i32_0 : i32, i32
  }
  func.func @transform_4(%arg0: i32) -> (i32, i32) {
    %c0_i32 = arith.constant 0 : i32
    %c0_i32_0 = arith.constant 0 : i32
    %c0_i32_1 = arith.constant 0 : i32
    return %c0_i32, %c0_i32_0 : i32, i32
  }
  func.func @transform_5(%arg0: i32) -> (i32, i32) {
    %c0_i32 = arith.constant 0 : i32
    %c0_i32_0 = arith.constant 0 : i32
    %c0_i32_1 = arith.constant 0 : i32
    return %c0_i32, %c0_i32_0 : i32, i32
  }
  func.func @transform_6(%arg0: i32) -> (i32, i32) {
    %c0_i32 = arith.constant 0 : i32
    %c0_i32_0 = arith.constant 0 : i32
    %c0_i32_1 = arith.constant 0 : i32
    return %c0_i32, %c0_i32_0 : i32, i32
  }
  func.func @transform_7(%arg0: i32) -> (i32, i32) {
    %c0_i32 = arith.constant 0 : i32
    %c0_i32_0 = arith.constant 0 : i32
    return %arg0, %c0_i32 : i32, i32
  }
}

</mosaic_0001>

<llo_original>
// kernel: tpu_custom_call.1
$region0: #{tpu_custom_call.1}
  #allocation0 [shape = 'u32[]', space=smem, size = 0x4, offset = 0x4, fixed_abs, tag = 'smem constant byte address 0x4 - core index']
  #allocation1 [shape = 'u32[144,128]{1,0:T(1,128)}', space=vmem, size = 0x12000, scoped, tag = 'internal scratch']
  %s0 = inlined_call_operand.hbm [shape: bf16[16,128], index: 0, kind: input, shape index: {}]
  %s1 = inlined_call_operand.hbm [shape: bf16[16,128], index: 1, kind: input, shape index: {}]
  %s2 = inlined_call_operand.hbm [shape: bf16[128,128], index: 2, kind: input, shape index: {}]
  %s3 = inlined_call_operand.hbm [shape: bf16[128,128], index: 3, kind: input, shape index: {}]
  %s4 = inlined_call_operand.vmem [shape: f32[1,128], index: 4, kind: input, shape index: {}]
  %s5 = inlined_call_operand.hbm [shape: bf16[128,128], index: 5, kind: input, shape index: {}]
  %s6 = inlined_call_operand.vmem [shape: f32[1,128], index: 6, kind: input, shape index: {}]
  %s7 = inlined_call_operand.hbm [shape: f32[16,128], index: 7, kind: output, shape index: {}]
  %s8 = sld [smem:[#allocation0]]
  $region81: #{tpu_custom_call.1} parent=0
    _
  %s10 = ssub.s32 1, %s8
  %s11 = scalar_select 0, %s10, %s8
  $region1: #{tpu_custom_call.1} parent=0
    #allocation2 [shape = 'u8[4096]{0}', space=vmem, size = 0x1000, scoped, tag = 'input window, operand 0']
    #allocation3 [shape = 's32[2]{0}', space=sflag, size = 0x8, scoped, tag = 'scoped memory for tpu_custom_call.1']
    #allocation4 [shape = 's32[2]{0}', space=sflag, size = 0x8, scoped, tag = 'scoped memory for tpu_custom_call.1']
    #allocation5 [shape = 'u8[4096]{0}', space=vmem, size = 0x1000, scoped, tag = 'input window, operand 1']
    #allocation6 [shape = 's32[2]{0}', space=sflag, size = 0x8, scoped, tag = 'scoped memory for tpu_custom_call.1']
    #allocation7 [shape = 'u8[32768]{0}', space=vmem, size = 0x8000, scoped, tag = 'input window, operand 2, single buffered']
    #allocation8 [shape = 'u8[32768]{0}', space=vmem, size = 0x8000, scoped, tag = 'input window, operand 3, single buffered']
    #allocation9 [shape = 's32[1]{0}', space=sflag, size = 0x4, scoped, tag = 'scoped memory for tpu_custom_call.1']
    #allocation10 [shape = 'u8[32768]{0}', space=vmem, size = 0x8000, scoped, tag = 'input window, operand 5, single buffered']
    #allocation11 [shape = 'u8[8192]{0}', space=vmem, size = 0x2000, scoped, tag = 'output window, operand 0']
    %12 = vsyncpa [#allocation3], 0
    %s13 = scalar_lea.sflag [#allocation3], 1
    %14 = vsyncpa %s13, 0
    %15 = vsyncpa [#allocation6], 0
    %s16 = scalar_lea.sflag [#allocation6], 1
    %17 = vsyncpa %s16, 0
    %18 = vsyncpa [#allocation9], 0
    %19 = vsyncpa [#allocation4], 0
    %s20 = scalar_lea.sflag [#allocation4], 1
    %21 = vsyncpa %s20, 0
    loop: start=0, step=1, limit=4
    $region2: #{tpu_custom_call.1} parent=1 // loop_pre_header
      _
    $region3: #{tpu_custom_call.1} parent=1 // loop_header
      %s23 = sphi 0, %s27
      %p24 = scmp.ge.s32.totalorder %s23, 4
      %s33 = sphi 0, %s35
      %s36 = sphi 0, %s33
      %s37 = sphi 0, %s36
      %s53 = sphi 0, %s37
      %s59 = sphi 0, %s61
      %s62 = sphi 0, %s59
      %s63 = sphi 0, %s62
      %s79 = sphi 0, %s63
      %s83 = sphi 0, %s83
      %s85 = sphi 0, %s83
      %s86 = sphi 0, %s85
      %s100 = sphi 0, %s86
      %s104 = sphi 0, %s104
      %s106 = sphi 0, %s104
      %s107 = sphi 0, %s106
      %s121 = sphi 0, %s107
      %s125 = sphi 0, %s125
      %s127 = sphi 0, %s125
      %s128 = sphi 0, %s127
      %s142 = sphi 0, %s128
      %s146 = sphi 0, %s146
      %s148 = sphi 0, %s146
      %s149 = sphi 0, %s148
      %s163 = sphi 0, %s149
      %s167 = sphi 0, %s167
      %s169 = sphi 0, %s167
      %s170 = sphi 0, %s169
      %s184 = sphi 0, %s170
      %s190 = sphi 0, %s192
      %s193 = sphi 0, %s190
      %s194 = sphi 0, %s193
      %s210 = sphi 0, %s194
    $region4: #{tpu_custom_call.1} parent=1 // loop_header_branch
      %26 = sbr.rel (%p24) target = $region8
    $region5: #{tpu_custom_call.1} parent=1 // loop_body
      %s28 = ssub.s32 %s23, 1
      %s29 = ssub.s32 %s23, 2
      %s30 = sadd.s32 %s23, 1
      %s31 = ssub.s32 %s23, %s30
      %p32 = scmp.eq.s32.totalorder %s31, 0
      %s34 = sadd.s32 %s33, 1
      %s35 = scalar_select %p32, %s33, %s34
      %p38 = pneg %p32
      %p39 = scmp.eq.s32.totalorder %s23, 1
      %p40 = por %p38, %p39
      %p41 = scmp.ne.s32.totalorder %s33, %s36
      %p42 = scmp.eq.s32.totalorder %s23, 0
      %p43 = por %p41, %p42
      %p44 = scmp.ne.s32.totalorder %s33, %s36
      %p45 = scmp.eq.s32.totalorder %s28, 1
      %p46 = por %p44, %p45
      %p47 = scmp.ne.s32.totalorder %s36, %s37
      %p48 = scmp.eq.s32.totalorder %s28, 0
      %p49 = por %p47, %p48
      %p50 = scmp.ne.s32.totalorder %s36, %s37
      %p51 = scmp.eq.s32.totalorder %s29, 1
      %p52 = por %p50, %p51
      %p54 = scmp.ne.s32.totalorder %s37, %s53
      %p55 = scmp.eq.s32.totalorder %s29, 0
      %p56 = por %p54, %p55
      %s57 = ssub.s32 %s23, %s30
      %p58 = scmp.eq.s32.totalorder %s57, 0
      %s60 = sadd.s32 %s59, 1
      %s61 = scalar_select %p58, %s59, %s60
      %p64 = pneg %p58
      %p65 = scmp.eq.s32.totalorder %s23, 1
      %p66 = por %p64, %p65
      %p67 = scmp.ne.s32.totalorder %s59, %s62
      %p68 = scmp.eq.s32.totalorder %s23, 0
      %p69 = por %p67, %p68
      %p70 = scmp.ne.s32.totalorder %s59, %s62
      %p71 = scmp.eq.s32.totalorder %s28, 1
      %p72 = por %p70, %p71
      %p73 = scmp.ne.s32.totalorder %s62, %s63
      %p74 = scmp.eq.s32.totalorder %s28, 0
      %p75 = por %p73, %p74
      %p76 = scmp.ne.s32.totalorder %s62, %s63
      %p77 = scmp.eq.s32.totalorder %s29, 1
      %p78 = por %p76, %p77
      %p80 = scmp.ne.s32.totalorder %s63, %s79
      %p81 = scmp.eq.s32.totalorder %s29, 0
      %p82 = por %p80, %p81
      %s84 = sadd.s32 %s83, 1
      %p87 = scmp.eq.s32.totalorder %s23, 1
      %p88 = scmp.ne.s32.totalorder %s83, %s85
      %p89 = scmp.eq.s32.totalorder %s23, 0
      %p90 = por %p88, %p89
      %p91 = scmp.ne.s32.totalorder %s83, %s85
      %p92 = scmp.eq.s32.totalorder %s28, 1
      %p93 = por %p91, %p92
      %p94 = scmp.ne.s32.totalorder %s85, %s86
      %p95 = scmp.eq.s32.totalorder %s28, 0
      %p96 = por %p94, %p95
      %p97 = scmp.ne.s32.totalorder %s85, %s86
      %p98 = scmp.eq.s32.totalorder %s29, 1
      %p99 = por %p97, %p98
      %p101 = scmp.ne.s32.totalorder %s86, %s100
      %p102 = scmp.eq.s32.totalorder %s29, 0
      %p103 = por %p101, %p102
      %s105 = sadd.s32 %s104, 1
      %p108 = scmp.eq.s32.totalorder %s23, 1
      %p109 = scmp.ne.s32.totalorder %s104, %s106
      %p110 = scmp.eq.s32.totalorder %s23, 0
      %p111 = por %p109, %p110
      %p112 = scmp.ne.s32.totalorder %s104, %s106
      %p113 = scmp.eq.s32.totalorder %s28, 1
      %p114 = por %p112, %p113
      %p115 = scmp.ne.s32.totalorder %s106, %s107
      %p116 = scmp.eq.s32.totalorder %s28, 0
      %p117 = por %p115, %p116
      %p118 = scmp.ne.s32.totalorder %s106, %s107
      %p119 = scmp.eq.s32.totalorder %s29, 1
      %p120 = por %p118, %p119
      %p122 = scmp.ne.s32.totalorder %s107, %s121
      %p123 = scmp.eq.s32.totalorder %s29, 0
      %p124 = por %p122, %p123
      %s126 = sadd.s32 %s125, 1
      %p129 = scmp.eq.s32.totalorder %s23, 1
      %p130 = scmp.ne.s32.totalorder %s125, %s127
      %p131 = scmp.eq.s32.totalorder %s23, 0
      %p132 = por %p130, %p131
      %p133 = scmp.ne.s32.totalorder %s125, %s127
      %p134 = scmp.eq.s32.totalorder %s28, 1
      %p135 = por %p133, %p134
      %p136 = scmp.ne.s32.totalorder %s127, %s128
      %p137 = scmp.eq.s32.totalorder %s28, 0
      %p138 = por %p136, %p137
      %p139 = scmp.ne.s32.totalorder %s127, %s128
      %p140 = scmp.eq.s32.totalorder %s29, 1
      %p141 = por %p139, %p140
      %p143 = scmp.ne.s32.totalorder %s128, %s142
      %p144 = scmp.eq.s32.totalorder %s29, 0
      %p145 = por %p143, %p144
      %s147 = sadd.s32 %s146, 1
      %p150 = scmp.eq.s32.totalorder %s23, 1
      %p151 = scmp.ne.s32.totalorder %s146, %s148
      %p152 = scmp.eq.s32.totalorder %s23, 0
      %p153 = por %p151, %p152
      %p154 = scmp.ne.s32.totalorder %s146, %s148
      %p155 = scmp.eq.s32.totalorder %s28, 1
      %p156 = por %p154, %p155
      %p157 = scmp.ne.s32.totalorder %s148, %s149
      %p158 = scmp.eq.s32.totalorder %s28, 0
      %p159 = por %p157, %p158
      %p160 = scmp.ne.s32.totalorder %s148, %s149
      %p161 = scmp.eq.s32.totalorder %s29, 1
      %p162 = por %p160, %p161
      %p164 = scmp.ne.s32.totalorder %s149, %s163
      %p165 = scmp.eq.s32.totalorder %s29, 0
      %p166 = por %p164, %p165
      %s168 = sadd.s32 %s167, 1
      %p171 = scmp.eq.s32.totalorder %s23, 1
      %p172 = scmp.ne.s32.totalorder %s167, %s169
      %p173 = scmp.eq.s32.totalorder %s23, 0
      %p174 = por %p172, %p173
      %p175 = scmp.ne.s32.totalorder %s167, %s169
      %p176 = scmp.eq.s32.totalorder %s28, 1
      %p177 = por %p175, %p176
      %p178 = scmp.ne.s32.totalorder %s169, %s170
      %p179 = scmp.eq.s32.totalorder %s28, 0
      %p180 = por %p178, %p179
      %p181 = scmp.ne.s32.totalorder %s169, %s170
      %p182 = scmp.eq.s32.totalorder %s29, 1
      %p183 = por %p181, %p182
      %p185 = scmp.ne.s32.totalorder %s170, %s184
      %p186 = scmp.eq.s32.totalorder %s29, 0
      %p187 = por %p185, %p186
      %s188 = ssub.s32 %s23, %s30
      %p189 = scmp.eq.s32.totalorder %s188, 0
      %s191 = sadd.s32 %s190, 1
      %s192 = scalar_select %p189, %s190, %s191
      %p195 = pneg %p189
      %p196 = scmp.eq.s32.totalorder %s23, 1
      %p197 = por %p195, %p196
      %p198 = scmp.ne.s32.totalorder %s190, %s193
      %p199 = scmp.eq.s32.totalorder %s23, 0
      %p200 = por %p198, %p199
      %p201 = scmp.ne.s32.totalorder %s190, %s193
      %p202 = scmp.eq.s32.totalorder %s28, 1
      %p203 = por %p201, %p202
      %p204 = scmp.ne.s32.totalorder %s193, %s194
      %p205 = scmp.eq.s32.totalorder %s28, 0
      %p206 = por %p204, %p205
      %p207 = scmp.ne.s32.totalorder %s193, %s194
      %p208 = scmp.eq.s32.totalorder %s29, 1
      %p209 = por %p207, %p208
      %p211 = scmp.ne.s32.totalorder %s194, %s210
      %p212 = scmp.eq.s32.totalorder %s29, 0
      %p213 = por %p211, %p212
      %p214 = scmp.le.s32.totalorder 1, %s23
      %p215 = scmp.lt.s32.totalorder %s23, 3
      %p216 = pnand %p214, %p215
      %p217 = pneg %p216
      // Predicated region
      $region9: #{tpu_custom_call.1} parent=5 // pred_check
        _
      $region10: #{tpu_custom_call.1} parent=5 // pred_check_branch
        %219 = sbr.rel (%p216) target = $region12
      $region11: #{tpu_custom_call.1} parent=5 // pred_region
        %s220 = ssub.s32 %s23, 1
        // Predicated region
        $region13: #{tpu_custom_call.1} parent=11 // pred_check
          %p221 = pneg %p96
        $region14: #{tpu_custom_call.1} parent=11 // pred_check_branch
          %223 = sbr.rel (%p221) target = $region16
        $region15: #{tpu_custom_call.1} parent=11 // pred_region
          %s225 = ssub.s32 1024, 1024
          %226 = vsyncadd [#allocation6], %s225
          %s227 = sshll.u32 [#allocation7], 4
          %s228 = int_to_ptr.vmem [resolvable:$true] %s227
          %233 = dma.hbm_to_vmem [thread:$0]  %s2, 1024, %s228, [#allocation6], 64, 64, 4
        $region16: #{tpu_custom_call.1} parent=11 // pred_fallthru
          _
        // Predicated region
        $region17: #{tpu_custom_call.1} parent=11 // pred_check
          %p234 = pneg %p117
        $region18: #{tpu_custom_call.1} parent=11 // pred_check_branch
          %236 = sbr.rel (%p234) target = $region20
        $region19: #{tpu_custom_call.1} parent=11 // pred_region
          %s238 = ssub.s32 1024, 1024
          %239 = vsyncadd [#allocation9], %s238
          %s240 = sshll.u32 [#allocation8], 4
          %s241 = int_to_ptr.vmem [resolvable:$true] %s240
          %246 = dma.hbm_to_vmem [thread:$0]  %s3, 1024, %s241, [#allocation9], 64, 64, 4
        $region20: #{tpu_custom_call.1} parent=11 // pred_fallthru
          _
        // Predicated region
        $region21: #{tpu_custom_call.1} parent=11 // pred_check
          %p247 = pneg %p138
        $region22: #{tpu_custom_call.1} parent=11 // pred_check_branch
          %249 = sbr.rel (%p247) target = $region24
        $region23: #{tpu_custom_call.1} parent=11 // pred_region
          _
        $region24: #{tpu_custom_call.1} parent=11 // pred_fallthru
          _
        // Predicated region
        $region25: #{tpu_custom_call.1} parent=11 // pred_check
          %p250 = pneg %p159
        $region26: #{tpu_custom_call.1} parent=11 // pred_check_branch
          %252 = sbr.rel (%p250) target = $region28
        $region27: #{tpu_custom_call.1} parent=11 // pred_region
          %s254 = ssub.s32 1024, 1024
          %255 = vsyncadd [#allocation9], %s254
          %s256 = sshll.u32 [#allocation10], 4
          %s257 = int_to_ptr.vmem [resolvable:$true] %s256
          %262 = dma.hbm_to_vmem [thread:$0]  %s5, 1024, %s257, [#allocation9], 64, 64, 4
        $region28: #{tpu_custom_call.1} parent=11 // pred_fallthru
          _
        // Predicated region
        $region29: #{tpu_custom_call.1} parent=11 // pred_check
          %p263 = pneg %p180
        $region30: #{tpu_custom_call.1} parent=11 // pred_check_branch
          %265 = sbr.rel (%p263) target = $region32
        $region31: #{tpu_custom_call.1} parent=11 // pred_region
          _
        $region32: #{tpu_custom_call.1} parent=11 // pred_fallthru
          _
      $region12: #{tpu_custom_call.1} parent=5 // pred_fallthru
        _
      %p266 = scmp.lt.s32.totalorder %s23, 2
      // Predicated region
      $region33: #{tpu_custom_call.1} parent=5 // pred_check
        %p267 = pneg %p266
      $region34: #{tpu_custom_call.1} parent=5 // pred_check_branch
        %269 = sbr.rel (%p267) target = $region36
      $region35: #{tpu_custom_call.1} parent=5 // pred_region
        // Predicated region
        $region37: #{tpu_custom_call.1} parent=35 // pred_check
          %p270 = pneg %p43
        $region38: #{tpu_custom_call.1} parent=35 // pred_check_branch
          %272 = sbr.rel (%p270) target = $region40
        $region39: #{tpu_custom_call.1} parent=35 // pred_region
          %s273 = sand.u32 %s33, 1
          %s274 = scalar_lea.sflag [#allocation3], %s273
          %s275 = sand.u32 %s33, 1
          %s276 = smul.addr %s275, 4
          %s277 = scalar_lea.vmem [#allocation2], %s276
          %s279 = ssub.s32 64, 64
          %280 = vsyncadd %s274, %s279
          %s281 = smul.addr %s23, 64
          %s282 = scalar_lea.hbm %s0, %s281
          %s284 = sshll.u32 %s277, 4
          %s285 = int_to_ptr.vmem [resolvable:$true] %s284
          %287 = dma.hbm_to_vmem [thread:$0]  %s282, 64, %s285, %s274
        $region40: #{tpu_custom_call.1} parent=35 // pred_fallthru
          _
        // Predicated region
        $region41: #{tpu_custom_call.1} parent=35 // pred_check
          %p288 = pneg %p69
        $region42: #{tpu_custom_call.1} parent=35 // pred_check_branch
          %290 = sbr.rel (%p288) target = $region44
        $region43: #{tpu_custom_call.1} parent=35 // pred_region
          %s291 = sand.u32 %s23, 1
          %s292 = scalar_lea.sflag [#allocation6], %s291
          %s293 = sand.u32 %s59, 1
          %s294 = smul.addr %s293, 4
          %s295 = scalar_lea.vmem [#allocation5], %s294
          %s297 = ssub.s32 64, 64
          %298 = vsyncadd %s292, %s297
          %s299 = smul.addr %s23, 64
          %s300 = scalar_lea.hbm %s1, %s299
          %s302 = sshll.u32 %s295, 4
          %s303 = int_to_ptr.vmem [resolvable:$true] %s302
          %305 = dma.hbm_to_vmem [thread:$0]  %s300, 64, %s303, %s292
        $region44: #{tpu_custom_call.1} parent=35 // pred_fallthru
          _
      $region36: #{tpu_custom_call.1} parent=5 // pred_fallthru
        _
      %p306 = scmp.le.s32.totalorder 1, %s23
      %p307 = scmp.lt.s32.totalorder %s23, 3
      %p308 = pnand %p306, %p307
      %p309 = pneg %p308
      // Predicated region
      $region45: #{tpu_custom_call.1} parent=5 // pred_check
        _
      $region46: #{tpu_custom_call.1} parent=5 // pred_check_branch
        %311 = sbr.rel (%p308) target = $region48
      $region47: #{tpu_custom_call.1} parent=5 // pred_region
        %s312 = ssub.s32 %s23, 1
        %s313 = sand.u32 %s36, 1
        %s314 = scalar_lea.sflag [#allocation3], %s313
        %s315 = sand.u32 %s36, 1
        %s316 = smul.addr %s315, 4
        %s317 = scalar_lea.vmem [#allocation2], %s316
        // Predicated region
        $region49: #{tpu_custom_call.1} parent=47 // pred_check
          %p318 = pneg %p49
        $region50: #{tpu_custom_call.1} parent=47 // pred_check_branch
          %320 = sbr.rel (%p318) target = $region52
        $region51: #{tpu_custom_call.1} parent=47 // pred_region
          %321 = dma.done %s314, 64
        $region52: #{tpu_custom_call.1} parent=47 // pred_fallthru
          _
        %s322 = sand.u32 %s28, 1
        %s323 = scalar_lea.sflag [#allocation6], %s322
        %s324 = sand.u32 %s62, 1
        %s325 = smul.addr %s324, 4
        %s326 = scalar_lea.vmem [#allocation5], %s325
        // Predicated region
        $region53: #{tpu_custom_call.1} parent=47 // pred_check
          %p327 = pneg %p75
        $region54: #{tpu_custom_call.1} parent=47 // pred_check_branch
          %329 = sbr.rel (%p327) target = $region56
        $region55: #{tpu_custom_call.1} parent=47 // pred_region
          %330 = dma.done %s323, 64
        $region56: #{tpu_custom_call.1} parent=47 // pred_fallthru
          _
        // Predicated region
        $region57: #{tpu_custom_call.1} parent=47 // pred_check
          %p331 = pneg %p96
        $region58: #{tpu_custom_call.1} parent=47 // pred_check_branch
          %333 = sbr.rel (%p331) target = $region60
        $region59: #{tpu_custom_call.1} parent=47 // pred_region
          %334 = dma.done [#allocation6], 1024
        $region60: #{tpu_custom_call.1} parent=47 // pred_fallthru
          _
        // Predicated region
        $region61: #{tpu_custom_call.1} parent=47 // pred_check
          %p335 = pneg %p117
        $region62: #{tpu_custom_call.1} parent=47 // pred_check_branch
          %337 = sbr.rel (%p335) target = $region64
        $region63: #{tpu_custom_call.1} parent=47 // pred_region
          %338 = dma.done [#allocation9], 1024
        $region64: #{tpu_custom_call.1} parent=47 // pred_fallthru
          _
        // Predicated region
        $region65: #{tpu_custom_call.1} parent=47 // pred_check
          %p339 = pneg %p159
        $region66: #{tpu_custom_call.1} parent=47 // pred_check_branch
          %341 = sbr.rel (%p339) target = $region68
        $region67: #{tpu_custom_call.1} parent=47 // pred_region
          %342 = dma.done [#allocation9], 1024
        $region68: #{tpu_custom_call.1} parent=47 // pred_fallthru
          _
        %s343 = sand.u32 %s36, 1
        %s344 = scalar_lea.sflag [#allocation3], %s343
        %s345 = sand.u32 %s36, 1
        %s346 = smul.addr %s345, 4
        %s347 = scalar_lea.vmem [#allocation2], %s346
        %p348 = pneg %p49
        %p349 = pneg %p46
        %s350 = sand.u32 %s28, 1
        %s351 = scalar_lea.sflag [#allocation6], %s350
        %s352 = sand.u32 %s62, 1
        %s353 = smul.addr %s352, 4
        %s354 = scalar_lea.vmem [#allocation5], %s353
        %p355 = pneg %p75
        %p356 = pneg %p72
        %p357 = pneg %p96
        %p358 = pneg %p93
        %p359 = pneg %p117
        %p360 = pneg %p114
        %p361 = pneg %p138
        %p362 = pneg %p135
        %p363 = pneg %p159
        %p364 = pneg %p156
        %p365 = pneg %p180
        %p366 = pneg %p177
        %p367 = pneg %p206
        %p368 = pneg %p203
        %s369 = sand.u32 %s193, 1
        %s370 = scalar_lea.sflag [#allocation4], %s369
        %s371 = sand.u32 %s193, 1
        %s372 = smul.addr %s371, 8
        %s373 = scalar_lea.vmem [#allocation11], %s372
        %v375 = vld [vmem:[%s317] sm:$0xf]
        %v376 = vld [vmem:[%s326] sm:$0xf]
        %v377 = vld [vmem:[#allocation7] sm:$0xf]
        %v378 = vld [vmem:[#allocation7 + $0x4] sm:$0xf]
        %v379 = vld [vmem:[#allocation7 + $0x8] sm:$0xf]
        %v380 = vld [vmem:[#allocation7 + $0xc] sm:$0xf]
        %v381 = vld [vmem:[#allocation7 + $0x10] sm:$0xf]
        %v382 = vld [vmem:[#allocation7 + $0x14] sm:$0xf]
        %v383 = vld [vmem:[#allocation7 + $0x18] sm:$0xf]
        %v384 = vld [vmem:[#allocation7 + $0x1c] sm:$0xf]
        %v385 = vld [vmem:[#allocation7 + $0x20] sm:$0xf]
        %v386 = vld [vmem:[#allocation7 + $0x24] sm:$0xf]
        %v387 = vld [vmem:[#allocation7 + $0x28] sm:$0xf]
        %v388 = vld [vmem:[#allocation7 + $0x2c] sm:$0xf]
        %v389 = vld [vmem:[#allocation7 + $0x30] sm:$0xf]
        %v390 = vld [vmem:[#allocation7 + $0x34] sm:$0xf]
        %v391 = vld [vmem:[#allocation7 + $0x38] sm:$0xf]
        %v392 = vld [vmem:[#allocation7 + $0x3c] sm:$0xf]
        %v393 = vld [vmem:[#allocation8] sm:$0xf]
        %v394 = vld [vmem:[#allocation8 + $0x4] sm:$0xf]
        %v395 = vld [vmem:[#allocation8 + $0x8] sm:$0xf]
        %v396 = vld [vmem:[#allocation8 + $0xc] sm:$0xf]
        %v397 = vld [vmem:[#allocation8 + $0x10] sm:$0xf]
        %v398 = vld [vmem:[#allocation8 + $0x14] sm:$0xf]
        %v399 = vld [vmem:[#allocation8 + $0x18] sm:$0xf]
        %v400 = vld [vmem:[#allocation8 + $0x1c] sm:$0xf]
        %v401 = vld [vmem:[#allocation8 + $0x20] sm:$0xf]
        %v402 = vld [vmem:[#allocation8 + $0x24] sm:$0xf]
        %v403 = vld [vmem:[#allocation8 + $0x28] sm:$0xf]
        %v404 = vld [vmem:[#allocation8 + $0x2c] sm:$0xf]
        %v405 = vld [vmem:[#allocation8 + $0x30] sm:$0xf]
        %v406 = vld [vmem:[#allocation8 + $0x34] sm:$0xf]
        %v407 = vld [vmem:[#allocation8 + $0x38] sm:$0xf]
        %v408 = vld [vmem:[#allocation8 + $0x3c] sm:$0xf]
        %v425 = vunpack.c.l.b16 %v393
        %v426 = vunpack.c.l.b16 %v394
        %v427 = vunpack.c.l.b16 %v395
        %v428 = vunpack.c.l.b16 %v396
        %v429 = vunpack.c.l.b16 %v397
        %v430 = vunpack.c.l.b16 %v398
        %v431 = vunpack.c.l.b16 %v399
        %v432 = vunpack.c.l.b16 %v400
        %v433 = vunpack.c.l.b16 %v401
        %v434 = vunpack.c.l.b16 %v402
        %v435 = vunpack.c.l.b16 %v403
        %v436 = vunpack.c.l.b16 %v404
        %v437 = vunpack.c.l.b16 %v405
        %v438 = vunpack.c.l.b16 %v406
        %v439 = vunpack.c.l.b16 %v407
        %v440 = vunpack.c.l.b16 %v408
        %v441 = vpack.c.b16 %v426, %v425
        %v442 = vpack.c.b16 %v428, %v427
        %v443 = vpack.c.b16 %v430, %v429
        %v444 = vpack.c.b16 %v432, %v431
        %v445 = vpack.c.b16 %v434, %v433
        %v446 = vpack.c.b16 %v436, %v435
        %v447 = vpack.c.b16 %v438, %v437
        %v448 = vpack.c.b16 %v440, %v439
        %457 = vmatprep.subr.bf16.mxu0 0
        %458 = vmatpush1.bf16.msra.mxu0 %v448
        %459 = vmatprep.subr.bf16.mxu0 0
        %460 = vmatpush1.bf16.msra.mxu0 %v447
        %461 = vmatprep.subr.bf16.mxu0 0
        %462 = vmatpush1.bf16.msra.mxu0 %v446
        %463 = vmatprep.subr.bf16.mxu0 0
        %464 = vmatpush1.bf16.msra.mxu0 %v445
        %465 = vmatprep.subr.bf16.mxu0 0
        %466 = vmatpush1.bf16.msra.mxu0 %v444
        %467 = vmatprep.subr.bf16.mxu0 0
        %468 = vmatpush1.bf16.msra.mxu0 %v443
        %469 = vmatprep.subr.bf16.mxu0 0
        %470 = vmatpush1.bf16.msra.mxu0 %v442
        %471 = vmatprep.subr.bf16.mxu0 0
        %472 = vmatpush1.bf16.msra.mxu0 %v441
        %473 = vmatprep.subr.bf16.mxu0 0
        %474 = vmatpush2.bf16.msra.mxu0 0
        %475 = vmatprep.subr.bf16.mxu0 0
        %476 = vmatpush2.bf16.msra.mxu0 0
        %477 = vmatprep.subr.bf16.mxu0 0
        %478 = vmatpush2.bf16.msra.mxu0 0
        %479 = vmatprep.subr.bf16.mxu0 0
        %480 = vmatpush2.bf16.msra.mxu0 0
        %481 = vmatprep.subr.bf16.mxu0 0
        %482 = vmatpush2.bf16.msra.mxu0 0
        %483 = vmatprep.subr.bf16.mxu0 0
        %484 = vmatpush2.bf16.msra.mxu0 0
        %485 = vmatprep.subr.bf16.mxu0 0
        %486 = vmatpush2.bf16.msra.mxu0 0
        %487 = vmatprep.subr.bf16.mxu0 0
        %488 = vmatpush2.bf16.msra.mxu0 0
        %489 = vmatprep.mubr.bf16.mxu0 0
        %490 = vmatmul.mubr.bf16.gmra.mxu0 %v376
        %v491 = vpop.f32.mrf.mxu0
        %v492 = vadd.f32 0.0, %v491
        %v493 = vpop.f32.mrf.mxu0
        %v494 = vpop.f32.mrf.mxu0
        %v495 = vpop.f32.mrf.mxu0
        %496 = vdwg.mxu0
        %v513 = vunpack.c.l.b16 %v377
        %v514 = vunpack.c.l.b16 %v378
        %v515 = vunpack.c.l.b16 %v379
        %v516 = vunpack.c.l.b16 %v380
        %v517 = vunpack.c.l.b16 %v381
        %v518 = vunpack.c.l.b16 %v382
        %v519 = vunpack.c.l.b16 %v383
        %v520 = vunpack.c.l.b16 %v384
        %v521 = vunpack.c.l.b16 %v385
        %v522 = vunpack.c.l.b16 %v386
        %v523 = vunpack.c.l.b16 %v387
        %v524 = vunpack.c.l.b16 %v388
        %v525 = vunpack.c.l.b16 %v389
        %v526 = vunpack.c.l.b16 %v390
        %v527 = vunpack.c.l.b16 %v391
        %v528 = vunpack.c.l.b16 %v392
        %v529 = vpack.c.b16 %v514, %v513
        %v530 = vpack.c.b16 %v516, %v515
        %v531 = vpack.c.b16 %v518, %v517
        %v532 = vpack.c.b16 %v520, %v519
        %v533 = vpack.c.b16 %v522, %v521
        %v534 = vpack.c.b16 %v524, %v523
        %v535 = vpack.c.b16 %v526, %v525
        %v536 = vpack.c.b16 %v528, %v527
        %545 = vmatprep.subr.bf16.mxu0 0
        %546 = vmatpush1.bf16.msra.mxu0 %v536
        %547 = vmatprep.subr.bf16.mxu0 0
        %548 = vmatpush1.bf16.msra.mxu0 %v535
        %549 = vmatprep.subr.bf16.mxu0 0
        %550 = vmatpush1.bf16.msra.mxu0 %v534
        %551 = vmatprep.subr.bf16.mxu0 0
        %552 = vmatpush1.bf16.msra.mxu0 %v533
        %553 = vmatprep.subr.bf16.mxu0 0
        %554 = vmatpush1.bf16.msra.mxu0 %v532
        %555 = vmatprep.subr.bf16.mxu0 0
        %556 = vmatpush1.bf16.msra.mxu0 %v531
        %557 = vmatprep.subr.bf16.mxu0 0
        %558 = vmatpush1.bf16.msra.mxu0 %v530
        %559 = vmatprep.subr.bf16.mxu0 0
        %560 = vmatpush1.bf16.msra.mxu0 %v529
        %561 = vmatprep.subr.bf16.mxu0 0
        %562 = vmatpush2.bf16.msra.mxu0 0
        %563 = vmatprep.subr.bf16.mxu0 0
        %564 = vmatpush2.bf16.msra.mxu0 0
        %565 = vmatprep.subr.bf16.mxu0 0
        %566 = vmatpush2.bf16.msra.mxu0 0
        %567 = vmatprep.subr.bf16.mxu0 0
        %568 = vmatpush2.bf16.msra.mxu0 0
        %569 = vmatprep.subr.bf16.mxu0 0
        %570 = vmatpush2.bf16.msra.mxu0 0
        %571 = vmatprep.subr.bf16.mxu0 0
        %572 = vmatpush2.bf16.msra.mxu0 0
        %573 = vmatprep.subr.bf16.mxu0 0
        %574 = vmatpush2.bf16.msra.mxu0 0
        %575 = vmatprep.subr.bf16.mxu0 0
        %576 = vmatpush2.bf16.msra.mxu0 0
        %577 = vmatprep.mubr.bf16.mxu0 0
        %578 = vmatmul.mubr.bf16.gmra.mxu0 %v375
        %v579 = vpop.f32.mrf.mxu0
        %v580 = vadd.f32 %v492, %v579
        %v581 = vpop.f32.mrf.mxu0
        %v582 = vpop.f32.mrf.mxu0
        %v583 = vpop.f32.mrf.mxu0
        %584 = vdwg.mxu0
        %v585 = vld [vmem:[%s4] sm:$0x1]
        %v587 = vlaneseq
        %v588 = vshrl.u32 %v587, 7
        %v589 = vsub.s32 0, %v588
        %v590 = vrot.slane %v585, %v589
        %v592 = vadd.f32 %v580, %v590
        %v593 = vxor.u32 %v592, 2147483648
        %v594 = vmul.f32 %v593, 1.442695
        %v595 = vpow.pop %v594
        %v596 = vadd.f32 %v595, 1.0
        %v597 = vrcp.pop %v596
        %v598 = vmul.f32 1.0, %v597
        %v599 = vunpack.c.l.bf16 %v375
        %v600 = vunpack.c.l.bf16 %v376
        %v601 = vsub.f32 %v600, %v599
        %v602 = vmul.f32 %v598, %v601
        %v603 = vadd.f32 %v599, %v602
        %v604 = vpack.c.bf16 %v603, %v603
        %v605 = vld [vmem:[#allocation10] sm:$0xf]
        %v606 = vld [vmem:[#allocation10 + $0x4] sm:$0xf]
        %v607 = vld [vmem:[#allocation10 + $0x8] sm:$0xf]
        %v608 = vld [vmem:[#allocation10 + $0xc] sm:$0xf]
        %v609 = vld [vmem:[#allocation10 + $0x10] sm:$0xf]
        %v610 = vld [vmem:[#allocation10 + $0x14] sm:$0xf]
        %v611 = vld [vmem:[#allocation10 + $0x18] sm:$0xf]
        %v612 = vld [vmem:[#allocation10 + $0x1c] sm:$0xf]
        %v613 = vld [vmem:[#allocation10 + $0x20] sm:$0xf]
        %v614 = vld [vmem:[#allocation10 + $0x24] sm:$0xf]
        %v615 = vld [vmem:[#allocation10 + $0x28] sm:$0xf]
        %v616 = vld [vmem:[#allocation10 + $0x2c] sm:$0xf]
        %v617 = vld [vmem:[#allocation10 + $0x30] sm:$0xf]
        %v618 = vld [vmem:[#allocation10 + $0x34] sm:$0xf]
        %v619 = vld [vmem:[#allocation10 + $0x38] sm:$0xf]
        %v620 = vld [vmem:[#allocation10 + $0x3c] sm:$0xf]
        %v621 = vld [vmem:[%s6] sm:$0x1]
        %v623 = vlaneseq
        %v624 = vshrl.u32 %v623, 7
        %v625 = vsub.s32 0, %v624
        %v626 = vrot.slane %v621, %v625
        %v644 = vunpack.c.l.b16 %v605
        %v645 = vunpack.c.l.b16 %v606
        %v646 = vunpack.c.l.b16 %v607
        %v647 = vunpack.c.l.b16 %v608
        %v648 = vunpack.c.l.b16 %v609
        %v649 = vunpack.c.l.b16 %v610
        %v650 = vunpack.c.l.b16 %v611
        %v651 = vunpack.c.l.b16 %v612
        %v652 = vunpack.c.l.b16 %v613
        %v653 = vunpack.c.l.b16 %v614
        %v654 = vunpack.c.l.b16 %v615
        %v655 = vunpack.c.l.b16 %v616
        %v656 = vunpack.c.l.b16 %v617
        %v657 = vunpack.c.l.b16 %v618
        %v658 = vunpack.c.l.b16 %v619
        %v659 = vunpack.c.l.b16 %v620
        %v660 = vpack.c.b16 %v645, %v644
        %v661 = vpack.c.b16 %v647, %v646
        %v662 = vpack.c.b16 %v649, %v648
        %v663 = vpack.c.b16 %v651, %v650
        %v664 = vpack.c.b16 %v653, %v652
        %v665 = vpack.c.b16 %v655, %v654
        %v666 = vpack.c.b16 %v657, %v656
        %v667 = vpack.c.b16 %v659, %v658
        %676 = vmatprep.subr.bf16.mxu0 0
        %677 = vmatpush1.bf16.msra.mxu0 %v667
        %678 = vmatprep.subr.bf16.mxu0 0
        %679 = vmatpush1.bf16.msra.mxu0 %v666
        %680 = vmatprep.subr.bf16.mxu0 0
        %681 = vmatpush1.bf16.msra.mxu0 %v665
        %682 = vmatprep.subr.bf16.mxu0 0
        %683 = vmatpush1.bf16.msra.mxu0 %v664
        %684 = vmatprep.subr.bf16.mxu0 0
        %685 = vmatpush1.bf16.msra.mxu0 %v663
        %686 = vmatprep.subr.bf16.mxu0 0
        %687 = vmatpush1.bf16.msra.mxu0 %v662
        %688 = vmatprep.subr.bf16.mxu0 0
        %689 = vmatpush1.bf16.msra.mxu0 %v661
        %690 = vmatprep.subr.bf16.mxu0 0
        %691 = vmatpush1.bf16.msra.mxu0 %v660
        %692 = vmatprep.subr.bf16.mxu0 0
        %693 = vmatpush2.bf16.msra.mxu0 0
        %694 = vmatprep.subr.bf16.mxu0 0
        %695 = vmatpush2.bf16.msra.mxu0 0
        %696 = vmatprep.subr.bf16.mxu0 0
        %697 = vmatpush2.bf16.msra.mxu0 0
        %698 = vmatprep.subr.bf16.mxu0 0
        %699 = vmatpush2.bf16.msra.mxu0 0
        %700 = vmatprep.subr.bf16.mxu0 0
        %701 = vmatpush2.bf16.msra.mxu0 0
        %702 = vmatprep.subr.bf16.mxu0 0
        %703 = vmatpush2.bf16.msra.mxu0 0
        %704 = vmatprep.subr.bf16.mxu0 0
        %705 = vmatpush2.bf16.msra.mxu0 0
        %706 = vmatprep.subr.bf16.mxu0 0
        %707 = vmatpush2.bf16.msra.mxu0 0
        %708 = vmatprep.mubr.bf16.mxu0 0
        %709 = vmatmul.mubr.bf16.gmra.mxu0 %v604
        %v710 = vpop.f32.mrf.mxu0
        %v711 = vadd.f32 %v626, %v710
        %v712 = vpop.f32.mrf.mxu0
        %v713 = vpop.f32.mrf.mxu0
        %v714 = vpop.f32.mrf.mxu0
        %715 = vdwg.mxu0
        %716 = vst [vmem:[%s373] sm:$0xff] %v711
        %s717 = sand.u32 %s193, 1
        %s718 = scalar_lea.sflag [#allocation4], %s717
        %s719 = sand.u32 %s193, 1
        %s720 = smul.addr %s719, 8
        %s721 = scalar_lea.vmem [#allocation11], %s720
        // Predicated region
        $region69: #{tpu_custom_call.1} parent=47 // pred_check
          %p722 = pneg %p203
        $region70: #{tpu_custom_call.1} parent=47 // pred_check_branch
          %724 = sbr.rel (%p722) target = $region72
        $region71: #{tpu_custom_call.1} parent=47 // pred_region
          %s726 = ssub.s32 128, 128
          %727 = vsyncadd %s718, %s726
          %s728 = smul.addr %s28, 128
          %s729 = scalar_lea.hbm %s7, %s728
          %s731 = sshll.u32 %s721, 4
          %s732 = int_to_ptr.vmem [resolvable:$true] %s731
          %734 = dma.vmem_to_hbm [thread:$0]  %s732, 128, %s729, %s718
        $region72: #{tpu_custom_call.1} parent=47 // pred_fallthru
          _
      $region48: #{tpu_custom_call.1} parent=5 // pred_fallthru
        _
      %p735 = scmp.le.s32.totalorder 2, %s23
      // Predicated region
      $region73: #{tpu_custom_call.1} parent=5 // pred_check
        %p736 = pneg %p735
      $region74: #{tpu_custom_call.1} parent=5 // pred_check_branch
        %738 = sbr.rel (%p736) target = $region76
      $region75: #{tpu_custom_call.1} parent=5 // pred_region
        %s739 = ssub.s32 %s23, 2
        // Predicated region
        $region77: #{tpu_custom_call.1} parent=75 // pred_check
          %p740 = pneg %p209
        $region78: #{tpu_custom_call.1} parent=75 // pred_check_branch
          %742 = sbr.rel (%p740) target = $region80
        $region79: #{tpu_custom_call.1} parent=75 // pred_region
          %s743 = sand.u32 %s194, 1
          %s744 = scalar_lea.sflag [#allocation4], %s743
          %s745 = sand.u32 %s194, 1
          %s746 = smul.addr %s745, 8
          %s747 = scalar_lea.vmem [#allocation11], %s746
          %748 = dma.done %s744, 128
        $region80: #{tpu_custom_call.1} parent=75 // pred_fallthru
          _
      $region76: #{tpu_custom_call.1} parent=5 // pred_fallthru
        _
    $region6: #{tpu_custom_call.1} parent=1 // loop_footer
      %s27 = sadd.s32 1, %s23
    $region7: #{tpu_custom_call.1} parent=1 // loop_footer_branch
      %22 = sbr.rel target = $region3
    $region8: #{tpu_custom_call.1} parent=1 // loop_exit
      _
    %749 = vsyncpa [#allocation3], 1
    %s750 = scalar_lea.sflag [#allocation3], 1
    %751 = vsyncpa %s750, 1
    %752 = vsyncpa [#allocation6], 1
    %s753 = scalar_lea.sflag [#allocation6], 1
    %754 = vsyncpa %s753, 1
    %755 = vsyncpa [#allocation9], 1
    %756 = vsyncpa [#allocation4], 1
    %s757 = scalar_lea.sflag [#allocation4], 1
    %758 = vsyncpa %s757, 1

</llo_original>
